<compile_context>
chip_gen: v6e
topology: v6e:2x2x1
jax: 0.10.0
libtpu: 0.0.40
codegen_flags: <defaults>
</compile_context>

<pallas_src>
import jax
import jax.numpy as jnp
from jax.experimental import pallas as pl
from jax.experimental.pallas import tpu as pltpu

NUM_FEATURES = 512   # e.g. resnet18/34 .fc.in_features
H1 = 256
H2 = 64
OUT = 1

H2_PAD = 128         # pad layer-2 output columns to a full MXU/lane width
OUT_PAD = 128        # pad layer-3 output columns -> lane-dense (TB, 128) stores


def _round_up(x, m):
    return ((x + m - 1) // m) * m


def _mlp_kernel(x_ref, w1_ref, b1_ref, w2_ref, b2_ref, w3_ref, b3_ref, o_ref):
    # Layer 1: (TB, F) @ (F, 256) on the MXU (bf16 in, f32 accumulate).
    x = x_ref[...]
    h1 = jnp.dot(x, w1_ref[...], preferred_element_type=jnp.float32) + b1_ref[...]
    h1 = jnp.maximum(h1, 0.0).astype(jnp.bfloat16)
    # Dropout(p=0.5): identity in eval mode.

    # Layer 2: (TB, 256) @ (256, 128)  (columns 64..127 are zero-padded).
    h2 = jnp.dot(h1, w2_ref[...], preferred_element_type=jnp.float32) + b2_ref[...]
    h2 = jnp.maximum(h2, 0.0).astype(jnp.bfloat16)
    # Dropout(p=0.5): identity in eval mode.

    # Layer 3: (TB, 128) @ (128, 128)  (only column 0 is meaningful; rest are zeros).
    out = jnp.dot(h2, w3_ref[...], preferred_element_type=jnp.float32) + b3_ref[...]
    o_ref[...] = out.astype(o_ref.dtype)   # lane-dense (TB, 128) unmasked store


def regressor_forward(x, params, *, tb=1024):
    """x: (B, NUM_FEATURES) float32 -> (B, 1) float32."""
    w1, b1, w2, b2, w3, b3 = params
    B, F = x.shape

    # Batch tile: 1024 rows (sized for v7x's 64 MiB VMEM); shrink for tiny batches.
    tb = min(tb, max(8, _round_up(B, 8)))
    b_pad = _round_up(B, tb)
    if b_pad != B:
        x = jnp.pad(x, ((0, b_pad - B), (0, 0)))

    # One-time layout/dtype prep (outside the grid): bf16 matmul operands,
    # zero-padded layer-2/3 weights for full-width MXU passes and lane-dense output.
    x_bf = x.astype(jnp.bfloat16)
    w1_bf = w1.astype(jnp.bfloat16)
    w2_bf = jnp.pad(w2, ((0, 0), (0, H2_PAD - H2))).astype(jnp.bfloat16)
    b2_p = jnp.pad(b2, ((0, 0), (0, H2_PAD - H2))).astype(jnp.float32)
    w3_bf = jnp.pad(w3, ((0, H2_PAD - H2), (0, OUT_PAD - OUT))).astype(jnp.bfloat16)
    b3_p = jnp.pad(b3, ((0, 0), (0, OUT_PAD - OUT))).astype(jnp.float32)
    b1_f = b1.astype(jnp.float32)

    grid = (b_pad // tb,)

    weight_bytes = (w1_bf.size + w2_bf.size + w3_bf.size) * 2 + (b1_f.size + b2_p.size + b3_p.size) * 4
    cost = pl.CostEstimate(
        flops=2 * b_pad * (F * H1 + H1 * H2_PAD + H2_PAD * OUT_PAD),
        transcendentals=0,
        bytes_accessed=b_pad * F * 2 + weight_bytes + b_pad * OUT_PAD * 4,
    )

    out_pad = pl.pallas_call(
        _mlp_kernel,
        out_shape=jax.ShapeDtypeStruct((b_pad, OUT_PAD), jnp.float32),
        grid=grid,
        in_specs=[
            pl.BlockSpec((tb, F), lambda i: (i, 0)),          # x: batch-tiled
            pl.BlockSpec((F, H1), lambda i: (0, 0)),          # w1: VMEM-resident
            pl.BlockSpec((1, H1), lambda i: (0, 0)),          # b1
            pl.BlockSpec((H1, H2_PAD), lambda i: (0, 0)),     # w2 (padded)
            pl.BlockSpec((1, H2_PAD), lambda i: (0, 0)),      # b2 (padded)
            pl.BlockSpec((H2_PAD, OUT_PAD), lambda i: (0, 0)),# w3 (padded)
            pl.BlockSpec((1, OUT_PAD), lambda i: (0, 0)),     # b3 (padded)
        ],
        out_specs=pl.BlockSpec((tb, OUT_PAD), lambda i: (i, 0)),
        compiler_params=pltpu.CompilerParams(
            dimension_semantics=("parallel",),
            vmem_limit_bytes=32 * 1024 * 1024,   # fits v7x (64 MiB) with headroom
        ),
        cost_estimate=cost,
    )(x_bf, w1_bf, b1_f, w2_bf, b2_p, w3_bf, b3_p)

    return out_pad[:B, :OUT]


def init_params(key):
    """Deterministic init matching nn.Linear's U(-1/sqrt(fan_in), 1/sqrt(fan_in))."""
    ks = jax.random.split(key, 6)

    def linear(kw, kb, fan_in, fan_out):
        bound = 1.0 / jnp.sqrt(float(fan_in))
        w = jax.random.uniform(kw, (fan_in, fan_out), jnp.float32, -bound, bound)
        b = jax.random.uniform(kb, (1, fan_out), jnp.float32, -bound, bound)
        return w, b

    w1, b1 = linear(ks[0], ks[1], NUM_FEATURES, H1)
    w2, b2 = linear(ks[2], ks[3], H1, H2)
    w3, b3 = linear(ks[4], ks[5], H2, OUT)
    return (w1, b1, w2, b2, w3, b3)


def _reference(x, params):
    w1, b1, w2, b2, w3, b3 = params
    h1 = jnp.maximum(x @ w1 + b1, 0.0)
    h2 = jnp.maximum(h1 @ w2 + b2, 0.0)
    return h2 @ w3 + b3


if __name__ == "__main__":
    key = jax.random.PRNGKey(0)
    k_x, k_p = jax.random.split(key)

    B = 8
    x = jax.random.normal(k_x, (B, NUM_FEATURES), jnp.float32)
    params = init_params(k_p)

    out = regressor_forward(x, params)
    out = jax.block_until_ready(out)

    ref = _reference(x, params)
    assert out.shape == (B, 1), out.shape
    # bf16 matmul inputs with f32 accumulation -> loosened tolerance vs the f32 reference.
    assert jnp.allclose(out, ref, atol=2e-2, rtol=2e-2), (
        float(jnp.max(jnp.abs(out - ref)))
    )
    print("KERNEL_OK")
</pallas_src>

<mosaic_0001>
module attributes {stable_mosaic.version = 11 : i64} {
  func.func @_mlp_kernel(%arg0: i32, %arg1: memref<8x512xbf16, #tpu.memory_space<vmem>>, %arg2: memref<512x256xbf16, #tpu.memory_space<vmem>>, %arg3: memref<1x256xf32, #tpu.memory_space<vmem>>, %arg4: memref<256x128xbf16, #tpu.memory_space<vmem>>, %arg5: memref<1x128xf32, #tpu.memory_space<vmem>>, %arg6: memref<128x128xbf16, #tpu.memory_space<vmem>>, %arg7: memref<1x128xf32, #tpu.memory_space<vmem>>, %arg8: memref<8x128xf32, #tpu.memory_space<vmem>>) attributes {dimension_semantics = [#tpu.dimension_semantics<parallel>], iteration_bounds = array<i64: 1>, scalar_prefetch = 0 : i64, scratch_operands = 0 : i64, tpu.core_type = #tpu.core_type<tc>, window_params = [{transform_indices = @transform_0, window_bounds = array<i64: 8, 512>}, {pipeline_mode = #tpu.pipeline_mode<synchronous>, transform_indices = @transform_1, window_bounds = array<i64: 512, 256>}, {pipeline_mode = #tpu.pipeline_mode<synchronous>, transform_indices = @transform_2, window_bounds = array<i64: 1, 256>}, {pipeline_mode = #tpu.pipeline_mode<synchronous>, transform_indices = @transform_3, window_bounds = array<i64: 256, 128>}, {pipeline_mode = #tpu.pipeline_mode<synchronous>, transform_indices = @transform_4, window_bounds = array<i64: 1, 128>}, {pipeline_mode = #tpu.pipeline_mode<synchronous>, transform_indices = @transform_5, window_bounds = array<i64: 128, 128>}, {pipeline_mode = #tpu.pipeline_mode<synchronous>, transform_indices = @transform_6, window_bounds = array<i64: 1, 128>}, {transform_indices = @transform_7, window_bounds = array<i64: 8, 128>}]} {
    %c0 = arith.constant 0 : index
    %c0_0 = arith.constant 0 : index
    %0 = vector.load %arg1[%c0, %c0_0] : memref<8x512xbf16, #tpu.memory_space<vmem>>, vector<8x512xbf16>
    %c0_1 = arith.constant 0 : index
    %c0_2 = arith.constant 0 : index
    %1 = vector.load %arg2[%c0_1, %c0_2] : memref<512x256xbf16, #tpu.memory_space<vmem>>, vector<512x256xbf16>
    %cst = arith.constant dense<0.000000e+00> : vector<8x256xf32>
    %2 = tpu.matmul %0, %1, %cst {dimension_numbers = #tpu.dot_dimension_numbers<[1], [0], [0], [1], [0, 0, 1, 1], [], []>} : vector<8x512xbf16>, vector<512x256xbf16>, vector<8x256xf32> -> vector<8x256xf32>
    %c0_3 = arith.constant 0 : index
    %c0_4 = arith.constant 0 : index
    %3 = vector.load %arg3[%c0_3, %c0_4] : memref<1x256xf32, #tpu.memory_space<vmem>>, vector<1x256xf32>
    %4 = vector.broadcast %3 : vector<1x256xf32> to vector<8x256xf32>
    %5 = arith.addf %2, %4 : vector<8x256xf32>
    %cst_5 = arith.constant 0.000000e+00 : f32
    %6 = vector.broadcast %cst_5 : f32 to vector<8x256xf32>
    %7 = arith.maximumf %5, %6 : vector<8x256xf32>
    %8 = arith.truncf %7 : vector<8x256xf32> to vector<8x256xbf16>
    %c0_6 = arith.constant 0 : index
    %c0_7 = arith.constant 0 : index
    %9 = vector.load %arg4[%c0_6, %c0_7] : memref<256x128xbf16, #tpu.memory_space<vmem>>, vector<256x128xbf16>
    %cst_8 = arith.constant dense<0.000000e+00> : vector<8x128xf32>
    %10 = tpu.matmul %8, %9, %cst_8 {dimension_numbers = #tpu.dot_dimension_numbers<[1], [0], [0], [1], [0, 0, 1, 1], [], []>} : vector<8x256xbf16>, vector<256x128xbf16>, vector<8x128xf32> -> vector<8x128xf32>
    %c0_9 = arith.constant 0 : index
    %c0_10 = arith.constant 0 : index
    %11 = vector.load %arg5[%c0_9, %c0_10] : memref<1x128xf32, #tpu.memory_space<vmem>>, vector<1x128xf32>
    %12 = vector.broadcast %11 : vector<1x128xf32> to vector<8x128xf32>
    %13 = arith.addf %10, %12 : vector<8x128xf32>
    %cst_11 = arith.constant 0.000000e+00 : f32
    %14 = vector.broadcast %cst_11 : f32 to vector<8x128xf32>
    %15 = arith.maximumf %13, %14 : vector<8x128xf32>
    %16 = arith.truncf %15 : vector<8x128xf32> to vector<8x128xbf16>
    %c0_12 = arith.constant 0 : index
    %c0_13 = arith.constant 0 : index
    %17 = vector.load %arg6[%c0_12, %c0_13] : memref<128x128xbf16, #tpu.memory_space<vmem>>, vector<128x128xbf16>
    %cst_14 = arith.constant dense<0.000000e+00> : vector<8x128xf32>
    %18 = tpu.matmul %16, %17, %cst_14 {dimension_numbers = #tpu.dot_dimension_numbers<[1], [0], [0], [1], [0, 0, 1, 1], [], []>} : vector<8x128xbf16>, vector<128x128xbf16>, vector<8x128xf32> -> vector<8x128xf32>
    %c0_15 = arith.constant 0 : index
    %c0_16 = arith.constant 0 : index
    %19 = vector.load %arg7[%c0_15, %c0_16] : memref<1x128xf32, #tpu.memory_space<vmem>>, vector<1x128xf32>
    %20 = vector.broadcast %19 : vector<1x128xf32> to vector<8x128xf32>
    %21 = arith.addf %18, %20 : vector<8x128xf32>
    %c0_17 = arith.constant 0 : index
    %c0_18 = arith.constant 0 : index
    %22 = vector.load %arg8[%c0_17, %c0_18] : memref<8x128xf32, #tpu.memory_space<vmem>>, vector<8x128xf32>
    tpu.vector_store %arg8[%c0_17, %c0_18], %21 {strides = array<i32>} : memref<8x128xf32, #tpu.memory_space<vmem>>, vector<8x128xf32>,
    return
  }
  func.func @transform_0(%arg0: i32) -> (i32, i32) {
    %c0_i32 = arith.constant 0 : i32
    %c0_i32_0 = arith.constant 0 : i32
    return %arg0, %c0_i32 : i32, i32
  }
  func.func @transform_1(%arg0: i32) -> (i32, i32) {
    %c0_i32 = arith.constant 0 : i32
    %c0_i32_0 = arith.constant 0 : i32
    %c0_i32_1 = arith.constant 0 : i32
    return %c0_i32, %c0_i32_0 : i32, i32
  }
  func.func @transform_2(%arg0: i32) -> (i32, i32) {
    %c0_i32 = arith.constant 0 : i32
    %c0_i32_0 = arith.constant 0 : i32
    %c0_i32_1 = arith.constant 0 : i32
    return %c0_i32, %c0_i32_0 : i32, i32
  }
  func.func @transform_3(%arg0: i32) -> (i32, i32) {
    %c0_i32 = arith.constant 0 : i32
    %c0_i32_0 = arith.constant 0 : i32
    %c0_i32_1 = arith.constant 0 : i32
    return %c0_i32, %c0_i32_0 : i32, i32
  }
  func.func @transform_4(%arg0: i32) -> (i32, i32) {
    %c0_i32 = arith.constant 0 : i32
    %c0_i32_0 = arith.constant 0 : i32
    %c0_i32_1 = arith.constant 0 : i32
    return %c0_i32, %c0_i32_0 : i32, i32
  }
  func.func @transform_5(%arg0: i32) -> (i32, i32) {
    %c0_i32 = arith.constant 0 : i32
    %c0_i32_0 = arith.constant 0 : i32
    %c0_i32_1 = arith.constant 0 : i32
    return %c0_i32, %c0_i32_0 : i32, i32
  }
  func.func @transform_6(%arg0: i32) -> (i32, i32) {
    %c0_i32 = arith.constant 0 : i32
    %c0_i32_0 = arith.constant 0 : i32
    %c0_i32_1 = arith.constant 0 : i32
    return %c0_i32, %c0_i32_0 : i32, i32
  }
  func.func @transform_7(%arg0: i32) -> (i32, i32) {
    %c0_i32 = arith.constant 0 : i32
    %c0_i32_0 = arith.constant 0 : i32
    return %arg0, %c0_i32 : i32, i32
  }
}

</mosaic_0001>

<llo_original>
// kernel: tpu_custom_call.1
$region0: #{tpu_custom_call.1}
  #allocation0 [shape = 'u32[]', space=smem, size = 0x4, offset = 0x4, fixed_abs, tag = 'smem constant byte address 0x4 - core index']
  #allocation1 [shape = 'u32[144,128]{1,0:T(1,128)}', space=vmem, size = 0x12000, scoped, tag = 'internal scratch']
  %s0 = inlined_call_operand.hbm [shape: bf16[8,512], index: 0, kind: input, shape index: {}]
  %s1 = inlined_call_operand.hbm [shape: bf16[512,256], index: 1, kind: input, shape index: {}]
  %s2 = inlined_call_operand.vmem [shape: f32[1,256], index: 2, kind: input, shape index: {}]
  %s3 = inlined_call_operand.hbm [shape: bf16[256,128], index: 3, kind: input, shape index: {}]
  %s4 = inlined_call_operand.vmem [shape: f32[1,128], index: 4, kind: input, shape index: {}]
  %s5 = inlined_call_operand.hbm [shape: bf16[128,128], index: 5, kind: input, shape index: {}]
  %s6 = inlined_call_operand.vmem [shape: f32[1,128], index: 6, kind: input, shape index: {}]
  %s7 = inlined_call_operand.hbm [shape: f32[8,128], index: 7, kind: output, shape index: {}]
  %s8 = sld [smem:[#allocation0]]
  $region54: #{tpu_custom_call.1} parent=0
    _
  %s10 = ssub.s32 1, %s8
  %s11 = scalar_select 0, %s10, %s8
  $region1: #{tpu_custom_call.1} parent=0
    #allocation2 [shape = 'u8[8192]{0}', space=vmem, size = 0x2000, scoped, tag = 'input window, operand 0, single buffered']
    #allocation3 [shape = 's32[1]{0}', space=sflag, size = 0x4, scoped, tag = 'scoped memory for tpu_custom_call.1']
    #allocation4 [shape = 's32[1]{0}', space=sflag, size = 0x4, scoped, tag = 'scoped memory for tpu_custom_call.1']
    #allocation5 [shape = 'u8[262144]{0}', space=vmem, size = 0x40000, scoped, tag = 'input window, operand 1, single buffered']
    #allocation6 [shape = 's32[1]{0}', space=sflag, size = 0x4, scoped, tag = 'scoped memory for tpu_custom_call.1']
    #allocation7 [shape = 'u8[65536]{0}', space=vmem, size = 0x10000, scoped, tag = 'input window, operand 3, single buffered']
    #allocation8 [shape = 'u8[32768]{0}', space=vmem, size = 0x8000, scoped, tag = 'input window, operand 5, single buffered']
    #allocation9 [shape = 's32[1]{0}', space=sflag, size = 0x4, scoped, tag = 'scoped memory for tpu_custom_call.1']
    #allocation10 [shape = 'u8[4096]{0}', space=vmem, size = 0x1000, scoped, tag = 'output window, operand 0, single buffered']
    %12 = vsyncpa [#allocation3], 0
    %13 = vsyncpa [#allocation6], 0
    %14 = vsyncpa [#allocation9], 0
    %15 = vsyncpa [#allocation4], 0
    // Predicated region
    $region2: #{tpu_custom_call.1} parent=1 // pred_check
      _
    $region3: #{tpu_custom_call.1} parent=1 // pred_check_branch
      %17 = sbr.rel (0) target = $region5
    $region4: #{tpu_custom_call.1} parent=1 // pred_region
      %s19 = ssub.s32 256, 256
      %20 = vsyncadd [#allocation3], %s19
      %s22 = sshll.u32 [#allocation2], 4
      %s23 = int_to_ptr.vmem [resolvable:$true] %s22
      %25 = dma.hbm_to_vmem [thread:$0]  %s0, 256, %s23, [#allocation3]
    $region5: #{tpu_custom_call.1} parent=1 // pred_fallthru
      _
    // Predicated region
    $region6: #{tpu_custom_call.1} parent=1 // pred_check
      _
    $region7: #{tpu_custom_call.1} parent=1 // pred_check_branch
      %27 = sbr.rel (0) target = $region9
    $region8: #{tpu_custom_call.1} parent=1 // pred_region
      %s29 = ssub.s32 8192, 8192
      %30 = vsyncadd [#allocation6], %s29
      %s31 = sshll.u32 [#allocation5], 4
      %s32 = int_to_ptr.vmem [resolvable:$true] %s31
      %37 = dma.hbm_to_vmem [thread:$0]  %s1, 8192, %s32, [#allocation6], 128, 128, 8
    $region9: #{tpu_custom_call.1} parent=1 // pred_fallthru
      _
    // Predicated region
    $region10: #{tpu_custom_call.1} parent=1 // pred_check
      _
    $region11: #{tpu_custom_call.1} parent=1 // pred_check_branch
      %39 = sbr.rel (0) target = $region13
    $region12: #{tpu_custom_call.1} parent=1 // pred_region
      _
    $region13: #{tpu_custom_call.1} parent=1 // pred_fallthru
      _
    // Predicated region
    $region14: #{tpu_custom_call.1} parent=1 // pred_check
      _
    $region15: #{tpu_custom_call.1} parent=1 // pred_check_branch
      %41 = sbr.rel (0) target = $region17
    $region16: #{tpu_custom_call.1} parent=1 // pred_region
      %s43 = ssub.s32 2048, 2048
      %44 = vsyncadd [#allocation6], %s43
      %s45 = sshll.u32 [#allocation7], 4
      %s46 = int_to_ptr.vmem [resolvable:$true] %s45
      %51 = dma.hbm_to_vmem [thread:$0]  %s3, 2048, %s46, [#allocation6], 64, 64, 4
    $region17: #{tpu_custom_call.1} parent=1 // pred_fallthru
      _
    // Predicated region
    $region18: #{tpu_custom_call.1} parent=1 // pred_check
      _
    $region19: #{tpu_custom_call.1} parent=1 // pred_check_branch
      %53 = sbr.rel (0) target = $region21
    $region20: #{tpu_custom_call.1} parent=1 // pred_region
      _
    $region21: #{tpu_custom_call.1} parent=1 // pred_fallthru
      _
    // Predicated region
    $region22: #{tpu_custom_call.1} parent=1 // pred_check
      _
    $region23: #{tpu_custom_call.1} parent=1 // pred_check_branch
      %55 = sbr.rel (0) target = $region25
    $region24: #{tpu_custom_call.1} parent=1 // pred_region
      %s57 = ssub.s32 1024, 1024
      %58 = vsyncadd [#allocation9], %s57
      %s59 = sshll.u32 [#allocation8], 4
      %s60 = int_to_ptr.vmem [resolvable:$true] %s59
      %65 = dma.hbm_to_vmem [thread:$0]  %s5, 1024, %s60, [#allocation9], 64, 64, 4
    $region25: #{tpu_custom_call.1} parent=1 // pred_fallthru
      _
    // Predicated region
    $region26: #{tpu_custom_call.1} parent=1 // pred_check
      _
    $region27: #{tpu_custom_call.1} parent=1 // pred_check_branch
      %67 = sbr.rel (0) target = $region29
    $region28: #{tpu_custom_call.1} parent=1 // pred_region
      _
    $region29: #{tpu_custom_call.1} parent=1 // pred_fallthru
      _
    // Predicated region
    $region30: #{tpu_custom_call.1} parent=1 // pred_check
      _
    $region31: #{tpu_custom_call.1} parent=1 // pred_check_branch
      %69 = sbr.rel (0) target = $region33
    $region32: #{tpu_custom_call.1} parent=1 // pred_region
      %70 = dma.done [#allocation3], 256
    $region33: #{tpu_custom_call.1} parent=1 // pred_fallthru
      _
    // Predicated region
    $region34: #{tpu_custom_call.1} parent=1 // pred_check
      _
    $region35: #{tpu_custom_call.1} parent=1 // pred_check_branch
      %72 = sbr.rel (0) target = $region37
    $region36: #{tpu_custom_call.1} parent=1 // pred_region
      %73 = dma.done [#allocation6], 8192
    $region37: #{tpu_custom_call.1} parent=1 // pred_fallthru
      _
    // Predicated region
    $region38: #{tpu_custom_call.1} parent=1 // pred_check
      _
    $region39: #{tpu_custom_call.1} parent=1 // pred_check_branch
      %75 = sbr.rel (0) target = $region41
    $region40: #{tpu_custom_call.1} parent=1 // pred_region
      %76 = dma.done [#allocation6], 2048
    $region41: #{tpu_custom_call.1} parent=1 // pred_fallthru
      _
    // Predicated region
    $region42: #{tpu_custom_call.1} parent=1 // pred_check
      _
    $region43: #{tpu_custom_call.1} parent=1 // pred_check_branch
      %78 = sbr.rel (0) target = $region45
    $region44: #{tpu_custom_call.1} parent=1 // pred_region
      %79 = dma.done [#allocation9], 1024
    $region45: #{tpu_custom_call.1} parent=1 // pred_fallthru
      _
    %v81 = vld [vmem:[#allocation2] sm:$0xff]
    %v82 = vld [vmem:[#allocation2 + $0x8] sm:$0xff]
    %v83 = vld [vmem:[#allocation5] sm:$0xff]
    %v84 = vld [vmem:[#allocation5 + $0x8] sm:$0xff]
    %v85 = vld [vmem:[#allocation5 + $0x10] sm:$0xff]
    %v86 = vld [vmem:[#allocation5 + $0x18] sm:$0xff]
    %v87 = vld [vmem:[#allocation5 + $0x20] sm:$0xff]
    %v88 = vld [vmem:[#allocation5 + $0x28] sm:$0xff]
    %v89 = vld [vmem:[#allocation5 + $0x30] sm:$0xff]
    %v90 = vld [vmem:[#allocation5 + $0x38] sm:$0xff]
    %v91 = vld [vmem:[#allocation5 + $0x40] sm:$0xff]
    %v92 = vld [vmem:[#allocation5 + $0x48] sm:$0xff]
    %v93 = vld [vmem:[#allocation5 + $0x50] sm:$0xff]
    %v94 = vld [vmem:[#allocation5 + $0x58] sm:$0xff]
    %v95 = vld [vmem:[#allocation5 + $0x60] sm:$0xff]
    %v96 = vld [vmem:[#allocation5 + $0x68] sm:$0xff]
    %v97 = vld [vmem:[#allocation5 + $0x70] sm:$0xff]
    %v98 = vld [vmem:[#allocation5 + $0x78] sm:$0xff]
    %v99 = vld [vmem:[#allocation5 + $0x80] sm:$0xff]
    %v100 = vld [vmem:[#allocation5 + $0x88] sm:$0xff]
    %v101 = vld [vmem:[#allocation5 + $0x90] sm:$0xff]
    %v102 = vld [vmem:[#allocation5 + $0x98] sm:$0xff]
    %v103 = vld [vmem:[#allocation5 + $0xa0] sm:$0xff]
    %v104 = vld [vmem:[#allocation5 + $0xa8] sm:$0xff]
    %v105 = vld [vmem:[#allocation5 + $0xb0] sm:$0xff]
    %v106 = vld [vmem:[#allocation5 + $0xb8] sm:$0xff]
    %v107 = vld [vmem:[#allocation5 + $0xc0] sm:$0xff]
    %v108 = vld [vmem:[#allocation5 + $0xc8] sm:$0xff]
    %v109 = vld [vmem:[#allocation5 + $0xd0] sm:$0xff]
    %v110 = vld [vmem:[#allocation5 + $0xd8] sm:$0xff]
    %v111 = vld [vmem:[#allocation5 + $0xe0] sm:$0xff]
    %v112 = vld [vmem:[#allocation5 + $0xe8] sm:$0xff]
    %v113 = vld [vmem:[#allocation5 + $0xf0] sm:$0xff]
    %v114 = vld [vmem:[#allocation5 + $0xf8] sm:$0xff]
    %v115 = vld [vmem:[#allocation5 + $0x100] sm:$0xff]
    %v116 = vld [vmem:[#allocation5 + $0x108] sm:$0xff]
    %v117 = vld [vmem:[#allocation5 + $0x110] sm:$0xff]
    %v118 = vld [vmem:[#allocation5 + $0x118] sm:$0xff]
    %v119 = vld [vmem:[#allocation5 + $0x120] sm:$0xff]
    %v120 = vld [vmem:[#allocation5 + $0x128] sm:$0xff]
    %v121 = vld [vmem:[#allocation5 + $0x130] sm:$0xff]
    %v122 = vld [vmem:[#allocation5 + $0x138] sm:$0xff]
    %v123 = vld [vmem:[#allocation5 + $0x140] sm:$0xff]
    %v124 = vld [vmem:[#allocation5 + $0x148] sm:$0xff]
    %v125 = vld [vmem:[#allocation5 + $0x150] sm:$0xff]
    %v126 = vld [vmem:[#allocation5 + $0x158] sm:$0xff]
    %v127 = vld [vmem:[#allocation5 + $0x160] sm:$0xff]
    %v128 = vld [vmem:[#allocation5 + $0x168] sm:$0xff]
    %v129 = vld [vmem:[#allocation5 + $0x170] sm:$0xff]
    %v130 = vld [vmem:[#allocation5 + $0x178] sm:$0xff]
    %v131 = vld [vmem:[#allocation5 + $0x180] sm:$0xff]
    %v132 = vld [vmem:[#allocation5 + $0x188] sm:$0xff]
    %v133 = vld [vmem:[#allocation5 + $0x190] sm:$0xff]
    %v134 = vld [vmem:[#allocation5 + $0x198] sm:$0xff]
    %v135 = vld [vmem:[#allocation5 + $0x1a0] sm:$0xff]
    %v136 = vld [vmem:[#allocation5 + $0x1a8] sm:$0xff]
    %v137 = vld [vmem:[#allocation5 + $0x1b0] sm:$0xff]
    %v138 = vld [vmem:[#allocation5 + $0x1b8] sm:$0xff]
    %v139 = vld [vmem:[#allocation5 + $0x1c0] sm:$0xff]
    %v140 = vld [vmem:[#allocation5 + $0x1c8] sm:$0xff]
    %v141 = vld [vmem:[#allocation5 + $0x1d0] sm:$0xff]
    %v142 = vld [vmem:[#allocation5 + $0x1d8] sm:$0xff]
    %v143 = vld [vmem:[#allocation5 + $0x1e0] sm:$0xff]
    %v144 = vld [vmem:[#allocation5 + $0x1e8] sm:$0xff]
    %v145 = vld [vmem:[#allocation5 + $0x1f0] sm:$0xff]
    %v146 = vld [vmem:[#allocation5 + $0x1f8] sm:$0xff]
    %v147 = vld [vmem:[%s2] sm:$0x3]
    %v149 = vlaneseq
    %v150 = vshrl.u32 %v149, 7
    %v151 = vsub.s32 0, %v150
    %v152 = vrot.slane %v147, %v151
    %v153 = vlaneseq
    %v154 = vshrl.u32 %v153, 7
    %v155 = vsub.s32 1, %v154
    %v156 = vrot.slane %v147, %v155
    %v161 = vunpack.c.l.b16 %v81
    %v162 = vunpack.c.h.b16 %v81
    %v163 = vunpack.c.l.b16 %v82
    %v164 = vunpack.c.h.b16 %v82
    %v165 = vpack.c.b16 %v161, %v161
    %v166 = vpack.c.b16 %v162, %v162
    %v167 = vpack.c.b16 %v163, %v163
    %v168 = vpack.c.b16 %v164, %v164
    %v237 = vunpack.c.l.b16 %v83
    %v238 = vunpack.c.h.b16 %v83
    %v239 = vunpack.c.l.b16 %v84
    %v240 = vunpack.c.h.b16 %v84
    %v241 = vunpack.c.l.b16 %v85
    %v242 = vunpack.c.h.b16 %v85
    %v243 = vunpack.c.l.b16 %v86
    %v244 = vunpack.c.h.b16 %v86
    %v245 = vunpack.c.l.b16 %v87
    %v246 = vunpack.c.h.b16 %v87
    %v247 = vunpack.c.l.b16 %v88
    %v248 = vunpack.c.h.b16 %v88
    %v249 = vunpack.c.l.b16 %v89
    %v250 = vunpack.c.h.b16 %v89
    %v251 = vunpack.c.l.b16 %v90
    %v252 = vunpack.c.h.b16 %v90
    %v253 = vunpack.c.l.b16 %v91
    %v254 = vunpack.c.h.b16 %v91
    %v255 = vunpack.c.l.b16 %v92
    %v256 = vunpack.c.h.b16 %v92
    %v257 = vunpack.c.l.b16 %v93
    %v258 = vunpack.c.h.b16 %v93
    %v259 = vunpack.c.l.b16 %v94
    %v260 = vunpack.c.h.b16 %v94
    %v261 = vunpack.c.l.b16 %v95
    %v262 = vunpack.c.h.b16 %v95
    %v263 = vunpack.c.l.b16 %v96
    %v264 = vunpack.c.h.b16 %v96
    %v265 = vunpack.c.l.b16 %v97
    %v266 = vunpack.c.h.b16 %v97
    %v267 = vunpack.c.l.b16 %v98
    %v268 = vunpack.c.h.b16 %v98
    %v269 = vunpack.c.l.b16 %v99
    %v270 = vunpack.c.h.b16 %v99
    %v271 = vunpack.c.l.b16 %v100
    %v272 = vunpack.c.h.b16 %v100
    %v273 = vunpack.c.l.b16 %v101
    %v274 = vunpack.c.h.b16 %v101
    %v275 = vunpack.c.l.b16 %v102
    %v276 = vunpack.c.h.b16 %v102
    %v277 = vunpack.c.l.b16 %v103
    %v278 = vunpack.c.h.b16 %v103
    %v279 = vunpack.c.l.b16 %v104
    %v280 = vunpack.c.h.b16 %v104
    %v281 = vunpack.c.l.b16 %v105
    %v282 = vunpack.c.h.b16 %v105
    %v283 = vunpack.c.l.b16 %v106
    %v284 = vunpack.c.h.b16 %v106
    %v285 = vunpack.c.l.b16 %v107
    %v286 = vunpack.c.h.b16 %v107
    %v287 = vunpack.c.l.b16 %v108
    %v288 = vunpack.c.h.b16 %v108
    %v289 = vunpack.c.l.b16 %v109
    %v290 = vunpack.c.h.b16 %v109
    %v291 = vunpack.c.l.b16 %v110
    %v292 = vunpack.c.h.b16 %v110
    %v293 = vunpack.c.l.b16 %v111
    %v294 = vunpack.c.h.b16 %v111
    %v295 = vunpack.c.l.b16 %v112
    %v296 = vunpack.c.h.b16 %v112
    %v297 = vunpack.c.l.b16 %v113
    %v298 = vunpack.c.h.b16 %v113
    %v299 = vunpack.c.l.b16 %v114
    %v300 = vunpack.c.h.b16 %v114
    %v301 = vunpack.c.l.b16 %v115
    %v302 = vunpack.c.h.b16 %v115
    %v303 = vunpack.c.l.b16 %v116
    %v304 = vunpack.c.h.b16 %v116
    %v305 = vunpack.c.l.b16 %v117
    %v306 = vunpack.c.h.b16 %v117
    %v307 = vunpack.c.l.b16 %v118
    %v308 = vunpack.c.h.b16 %v118
    %v309 = vunpack.c.l.b16 %v119
    %v310 = vunpack.c.h.b16 %v119
    %v311 = vunpack.c.l.b16 %v120
    %v312 = vunpack.c.h.b16 %v120
    %v313 = vunpack.c.l.b16 %v121
    %v314 = vunpack.c.h.b16 %v121
    %v315 = vunpack.c.l.b16 %v122
    %v316 = vunpack.c.h.b16 %v122
    %v317 = vunpack.c.l.b16 %v123
    %v318 = vunpack.c.h.b16 %v123
    %v319 = vunpack.c.l.b16 %v124
    %v320 = vunpack.c.h.b16 %v124
    %v321 = vunpack.c.l.b16 %v125
    %v322 = vunpack.c.h.b16 %v125
    %v323 = vunpack.c.l.b16 %v126
    %v324 = vunpack.c.h.b16 %v126
    %v325 = vunpack.c.l.b16 %v127
    %v326 = vunpack.c.h.b16 %v127
    %v327 = vunpack.c.l.b16 %v128
    %v328 = vunpack.c.h.b16 %v128
    %v329 = vunpack.c.l.b16 %v129
    %v330 = vunpack.c.h.b16 %v129
    %v331 = vunpack.c.l.b16 %v130
    %v332 = vunpack.c.h.b16 %v130
    %v333 = vunpack.c.l.b16 %v131
    %v334 = vunpack.c.h.b16 %v131
    %v335 = vunpack.c.l.b16 %v132
    %v336 = vunpack.c.h.b16 %v132
    %v337 = vunpack.c.l.b16 %v133
    %v338 = vunpack.c.h.b16 %v133
    %v339 = vunpack.c.l.b16 %v134
    %v340 = vunpack.c.h.b16 %v134
    %v341 = vunpack.c.l.b16 %v135
    %v342 = vunpack.c.h.b16 %v135
    %v343 = vunpack.c.l.b16 %v136
    %v344 = vunpack.c.h.b16 %v136
    %v345 = vunpack.c.l.b16 %v137
    %v346 = vunpack.c.h.b16 %v137
    %v347 = vunpack.c.l.b16 %v138
    %v348 = vunpack.c.h.b16 %v138
    %v349 = vunpack.c.l.b16 %v139
    %v350 = vunpack.c.h.b16 %v139
    %v351 = vunpack.c.l.b16 %v140
    %v352 = vunpack.c.h.b16 %v140
    %v353 = vunpack.c.l.b16 %v141
    %v354 = vunpack.c.h.b16 %v141
    %v355 = vunpack.c.l.b16 %v142
    %v356 = vunpack.c.h.b16 %v142
    %v357 = vunpack.c.l.b16 %v143
    %v358 = vunpack.c.h.b16 %v143
    %v359 = vunpack.c.l.b16 %v144
    %v360 = vunpack.c.h.b16 %v144
    %v361 = vunpack.c.l.b16 %v145
    %v362 = vunpack.c.h.b16 %v145
    %v363 = vunpack.c.l.b16 %v146
    %v364 = vunpack.c.h.b16 %v146
    %v365 = vpack.c.b16 %v239, %v237
    %v366 = vpack.c.b16 %v240, %v238
    %v367 = vpack.c.b16 %v243, %v241
    %v368 = vpack.c.b16 %v244, %v242
    %v369 = vpack.c.b16 %v247, %v245
    %v370 = vpack.c.b16 %v248, %v246
    %v371 = vpack.c.b16 %v251, %v249
    %v372 = vpack.c.b16 %v252, %v250
    %v373 = vpack.c.b16 %v255, %v253
    %v374 = vpack.c.b16 %v256, %v254
    %v375 = vpack.c.b16 %v259, %v257
    %v376 = vpack.c.b16 %v260, %v258
    %v377 = vpack.c.b16 %v263, %v261
    %v378 = vpack.c.b16 %v264, %v262
    %v379 = vpack.c.b16 %v267, %v265
    %v380 = vpack.c.b16 %v268, %v266
    %v381 = vpack.c.b16 %v271, %v269
    %v382 = vpack.c.b16 %v272, %v270
    %v383 = vpack.c.b16 %v275, %v273
    %v384 = vpack.c.b16 %v276, %v274
    %v385 = vpack.c.b16 %v279, %v277
    %v386 = vpack.c.b16 %v280, %v278
    %v387 = vpack.c.b16 %v283, %v281
    %v388 = vpack.c.b16 %v284, %v282
    %v389 = vpack.c.b16 %v287, %v285
    %v390 = vpack.c.b16 %v288, %v286
    %v391 = vpack.c.b16 %v291, %v289
    %v392 = vpack.c.b16 %v292, %v290
    %v393 = vpack.c.b16 %v295, %v293
    %v394 = vpack.c.b16 %v296, %v294
    %v395 = vpack.c.b16 %v299, %v297
    %v396 = vpack.c.b16 %v300, %v298
    %v397 = vpack.c.b16 %v303, %v301
    %v398 = vpack.c.b16 %v304, %v302
    %v399 = vpack.c.b16 %v307, %v305
    %v400 = vpack.c.b16 %v308, %v306
    %v401 = vpack.c.b16 %v311, %v309
    %v402 = vpack.c.b16 %v312, %v310
    %v403 = vpack.c.b16 %v315, %v313
    %v404 = vpack.c.b16 %v316, %v314
    %v405 = vpack.c.b16 %v319, %v317
    %v406 = vpack.c.b16 %v320, %v318
    %v407 = vpack.c.b16 %v323, %v321
    %v408 = vpack.c.b16 %v324, %v322
    %v409 = vpack.c.b16 %v327, %v325
    %v410 = vpack.c.b16 %v328, %v326
    %v411 = vpack.c.b16 %v331, %v329
    %v412 = vpack.c.b16 %v332, %v330
    %v413 = vpack.c.b16 %v335, %v333
    %v414 = vpack.c.b16 %v336, %v334
    %v415 = vpack.c.b16 %v339, %v337
    %v416 = vpack.c.b16 %v340, %v338
    %v417 = vpack.c.b16 %v343, %v341
    %v418 = vpack.c.b16 %v344, %v342
    %v419 = vpack.c.b16 %v347, %v345
    %v420 = vpack.c.b16 %v348, %v346
    %v421 = vpack.c.b16 %v351, %v349
    %v422 = vpack.c.b16 %v352, %v350
    %v423 = vpack.c.b16 %v355, %v353
    %v424 = vpack.c.b16 %v356, %v354
    %v425 = vpack.c.b16 %v359, %v357
    %v426 = vpack.c.b16 %v360, %v358
    %v427 = vpack.c.b16 %v363, %v361
    %v428 = vpack.c.b16 %v364, %v362
    %493 = vmatprep.subr.bf16.mxu0 %v380
    %494 = vmatpush1.bf16.msra.mxu0 %v379
    %495 = vmatprep.subr.bf16.mxu0 %v378
    %496 = vmatpush1.bf16.msra.mxu0 %v377
    %497 = vmatprep.subr.bf16.mxu0 %v376
    %498 = vmatpush1.bf16.msra.mxu0 %v375
    %499 = vmatprep.subr.bf16.mxu0 %v374
    %500 = vmatpush1.bf16.msra.mxu0 %v373
    %501 = vmatprep.subr.bf16.mxu0 %v372
    %502 = vmatpush1.bf16.msra.mxu0 %v371
    %503 = vmatprep.subr.bf16.mxu0 %v370
    %504 = vmatpush1.bf16.msra.mxu0 %v369
    %505 = vmatprep.subr.bf16.mxu0 %v368
    %506 = vmatpush1.bf16.msra.mxu0 %v367
    %507 = vmatprep.subr.bf16.mxu0 %v366
    %508 = vmatpush1.bf16.msra.mxu0 %v365
    %509 = vmatprep.subr.bf16.mxu0 %v396
    %510 = vmatpush2.bf16.msra.mxu0 %v395
    %511 = vmatprep.subr.bf16.mxu0 %v394
    %512 = vmatpush2.bf16.msra.mxu0 %v393
    %513 = vmatprep.subr.bf16.mxu0 %v392
    %514 = vmatpush2.bf16.msra.mxu0 %v391
    %515 = vmatprep.subr.bf16.mxu0 %v390
    %516 = vmatpush2.bf16.msra.mxu0 %v389
    %517 = vmatprep.subr.bf16.mxu0 %v388
    %518 = vmatpush2.bf16.msra.mxu0 %v387
    %519 = vmatprep.subr.bf16.mxu0 %v386
    %520 = vmatpush2.bf16.msra.mxu0 %v385
    %521 = vmatprep.subr.bf16.mxu0 %v384
    %522 = vmatpush2.bf16.msra.mxu0 %v383
    %523 = vmatprep.subr.bf16.mxu0 %v382
    %524 = vmatpush2.bf16.msra.mxu0 %v381
    %525 = vmatprep.mubr.bf16.mxu0 %v166
    %526 = vmatmul.mubr.bf16.gmra.mxu0 %v165
    %v527 = vpop.f32.mrf.mxu0
    %v528 = vadd.f32 %v152, %v527
    %v529 = vpop.f32.mrf.mxu0
    %v530 = vadd.f32 %v156, %v529
    %v531 = vpop.f32.mrf.mxu0
    %v532 = vpop.f32.mrf.mxu0
    %533 = vdwg.mxu0
    %534 = vmatprep.subr.bf16.mxu0 %v412
    %535 = vmatpush1.bf16.msra.mxu0 %v411
    %536 = vmatprep.subr.bf16.mxu0 %v410
    %537 = vmatpush1.bf16.msra.mxu0 %v409
    %538 = vmatprep.subr.bf16.mxu0 %v408
    %539 = vmatpush1.bf16.msra.mxu0 %v407
    %540 = vmatprep.subr.bf16.mxu0 %v406
    %541 = vmatpush1.bf16.msra.mxu0 %v405
    %542 = vmatprep.subr.bf16.mxu0 %v404
    %543 = vmatpush1.bf16.msra.mxu0 %v403
    %544 = vmatprep.subr.bf16.mxu0 %v402
    %545 = vmatpush1.bf16.msra.mxu0 %v401
    %546 = vmatprep.subr.bf16.mxu0 %v400
    %547 = vmatpush1.bf16.msra.mxu0 %v399
    %548 = vmatprep.subr.bf16.mxu0 %v398
    %549 = vmatpush1.bf16.msra.mxu0 %v397
    %550 = vmatprep.subr.bf16.mxu0 %v428
    %551 = vmatpush2.bf16.msra.mxu0 %v427
    %552 = vmatprep.subr.bf16.mxu0 %v426
    %553 = vmatpush2.bf16.msra.mxu0 %v425
    %554 = vmatprep.subr.bf16.mxu0 %v424
    %555 = vmatpush2.bf16.msra.mxu0 %v423
    %556 = vmatprep.subr.bf16.mxu0 %v422
    %557 = vmatpush2.bf16.msra.mxu0 %v421
    %558 = vmatprep.subr.bf16.mxu0 %v420
    %559 = vmatpush2.bf16.msra.mxu0 %v419
    %560 = vmatprep.subr.bf16.mxu0 %v418
    %561 = vmatpush2.bf16.msra.mxu0 %v417
    %562 = vmatprep.subr.bf16.mxu0 %v416
    %563 = vmatpush2.bf16.msra.mxu0 %v415
    %564 = vmatprep.subr.bf16.mxu0 %v414
    %565 = vmatpush2.bf16.msra.mxu0 %v413
    %566 = vmatprep.mubr.bf16.mxu0 %v168
    %567 = vmatmul.mubr.bf16.gmra.mxu0 %v167
    %v568 = vpop.f32.mrf.mxu0
    %v569 = vadd.f32 %v528, %v568
    %v570 = vpop.f32.mrf.mxu0
    %v571 = vadd.f32 %v530, %v570
    %v572 = vpop.f32.mrf.mxu0
    %v573 = vpop.f32.mrf.mxu0
    %574 = vdwg.mxu0
    %v575 = vmax.f32 %v569, 0.0
    %v576 = vmax.f32 %v571, 0.0
    %v577 = vpack.c.bf16 %v575, %v575
    %v578 = vpack.c.bf16 %v576, %v576
    %v579 = vld [vmem:[#allocation7] sm:$0xf]
    %v580 = vld [vmem:[#allocation7 + $0x4] sm:$0xf]
    %v581 = vld [vmem:[#allocation7 + $0x8] sm:$0xf]
    %v582 = vld [vmem:[#allocation7 + $0xc] sm:$0xf]
    %v583 = vld [vmem:[#allocation7 + $0x10] sm:$0xf]
    %v584 = vld [vmem:[#allocation7 + $0x14] sm:$0xf]
    %v585 = vld [vmem:[#allocation7 + $0x18] sm:$0xf]
    %v586 = vld [vmem:[#allocation7 + $0x1c] sm:$0xf]
    %v587 = vld [vmem:[#allocation7 + $0x20] sm:$0xf]
    %v588 = vld [vmem:[#allocation7 + $0x24] sm:$0xf]
    %v589 = vld [vmem:[#allocation7 + $0x28] sm:$0xf]
    %v590 = vld [vmem:[#allocation7 + $0x2c] sm:$0xf]
    %v591 = vld [vmem:[#allocation7 + $0x30] sm:$0xf]
    %v592 = vld [vmem:[#allocation7 + $0x34] sm:$0xf]
    %v593 = vld [vmem:[#allocation7 + $0x38] sm:$0xf]
    %v594 = vld [vmem:[#allocation7 + $0x3c] sm:$0xf]
    %v595 = vld [vmem:[#allocation7 + $0x40] sm:$0xf]
    %v596 = vld [vmem:[#allocation7 + $0x44] sm:$0xf]
    %v597 = vld [vmem:[#allocation7 + $0x48] sm:$0xf]
    %v598 = vld [vmem:[#allocation7 + $0x4c] sm:$0xf]
    %v599 = vld [vmem:[#allocation7 + $0x50] sm:$0xf]
    %v600 = vld [vmem:[#allocation7 + $0x54] sm:$0xf]
    %v601 = vld [vmem:[#allocation7 + $0x58] sm:$0xf]
    %v602 = vld [vmem:[#allocation7 + $0x5c] sm:$0xf]
    %v603 = vld [vmem:[#allocation7 + $0x60] sm:$0xf]
    %v604 = vld [vmem:[#allocation7 + $0x64] sm:$0xf]
    %v605 = vld [vmem:[#allocation7 + $0x68] sm:$0xf]
    %v606 = vld [vmem:[#allocation7 + $0x6c] sm:$0xf]
    %v607 = vld [vmem:[#allocation7 + $0x70] sm:$0xf]
    %v608 = vld [vmem:[#allocation7 + $0x74] sm:$0xf]
    %v609 = vld [vmem:[#allocation7 + $0x78] sm:$0xf]
    %v610 = vld [vmem:[#allocation7 + $0x7c] sm:$0xf]
    %v611 = vld [vmem:[%s4] sm:$0x1]
    %v613 = vlaneseq
    %v614 = vshrl.u32 %v613, 7
    %v615 = vsub.s32 0, %v614
    %v616 = vrot.slane %v611, %v615
    %v650 = vunpack.c.l.b16 %v579
    %v651 = vunpack.c.l.b16 %v580
    %v652 = vunpack.c.l.b16 %v581
    %v653 = vunpack.c.l.b16 %v582
    %v654 = vunpack.c.l.b16 %v583
    %v655 = vunpack.c.l.b16 %v584
    %v656 = vunpack.c.l.b16 %v585
    %v657 = vunpack.c.l.b16 %v586
    %v658 = vunpack.c.l.b16 %v587
    %v659 = vunpack.c.l.b16 %v588
    %v660 = vunpack.c.l.b16 %v589
    %v661 = vunpack.c.l.b16 %v590
    %v662 = vunpack.c.l.b16 %v591
    %v663 = vunpack.c.l.b16 %v592
    %v664 = vunpack.c.l.b16 %v593
    %v665 = vunpack.c.l.b16 %v594
    %v666 = vunpack.c.l.b16 %v595
    %v667 = vunpack.c.l.b16 %v596
    %v668 = vunpack.c.l.b16 %v597
    %v669 = vunpack.c.l.b16 %v598
    %v670 = vunpack.c.l.b16 %v599
    %v671 = vunpack.c.l.b16 %v600
    %v672 = vunpack.c.l.b16 %v601
    %v673 = vunpack.c.l.b16 %v602
    %v674 = vunpack.c.l.b16 %v603
    %v675 = vunpack.c.l.b16 %v604
    %v676 = vunpack.c.l.b16 %v605
    %v677 = vunpack.c.l.b16 %v606
    %v678 = vunpack.c.l.b16 %v607
    %v679 = vunpack.c.l.b16 %v608
    %v680 = vunpack.c.l.b16 %v609
    %v681 = vunpack.c.l.b16 %v610
    %v682 = vpack.c.b16 %v651, %v650
    %v683 = vpack.c.b16 %v653, %v652
    %v684 = vpack.c.b16 %v655, %v654
    %v685 = vpack.c.b16 %v657, %v656
    %v686 = vpack.c.b16 %v659, %v658
    %v687 = vpack.c.b16 %v661, %v660
    %v688 = vpack.c.b16 %v663, %v662
    %v689 = vpack.c.b16 %v665, %v664
    %v690 = vpack.c.b16 %v667, %v666
    %v691 = vpack.c.b16 %v669, %v668
    %v692 = vpack.c.b16 %v671, %v670
    %v693 = vpack.c.b16 %v673, %v672
    %v694 = vpack.c.b16 %v675, %v674
    %v695 = vpack.c.b16 %v677, %v676
    %v696 = vpack.c.b16 %v679, %v678
    %v697 = vpack.c.b16 %v681, %v680
    %714 = vmatprep.subr.bf16.mxu0 0
    %715 = vmatpush1.bf16.msra.mxu0 %v689
    %716 = vmatprep.subr.bf16.mxu0 0
    %717 = vmatpush1.bf16.msra.mxu0 %v688
    %718 = vmatprep.subr.bf16.mxu0 0
    %719 = vmatpush1.bf16.msra.mxu0 %v687
    %720 = vmatprep.subr.bf16.mxu0 0
    %721 = vmatpush1.bf16.msra.mxu0 %v686
    %722 = vmatprep.subr.bf16.mxu0 0
    %723 = vmatpush1.bf16.msra.mxu0 %v685
    %724 = vmatprep.subr.bf16.mxu0 0
    %725 = vmatpush1.bf16.msra.mxu0 %v684
    %726 = vmatprep.subr.bf16.mxu0 0
    %727 = vmatpush1.bf16.msra.mxu0 %v683
    %728 = vmatprep.subr.bf16.mxu0 0
    %729 = vmatpush1.bf16.msra.mxu0 %v682
    %730 = vmatprep.subr.bf16.mxu0 0
    %731 = vmatpush2.bf16.msra.mxu0 %v697
    %732 = vmatprep.subr.bf16.mxu0 0
    %733 = vmatpush2.bf16.msra.mxu0 %v696
    %734 = vmatprep.subr.bf16.mxu0 0
    %735 = vmatpush2.bf16.msra.mxu0 %v695
    %736 = vmatprep.subr.bf16.mxu0 0
    %737 = vmatpush2.bf16.msra.mxu0 %v694
    %738 = vmatprep.subr.bf16.mxu0 0
    %739 = vmatpush2.bf16.msra.mxu0 %v693
    %740 = vmatprep.subr.bf16.mxu0 0
    %741 = vmatpush2.bf16.msra.mxu0 %v692
    %742 = vmatprep.subr.bf16.mxu0 0
    %743 = vmatpush2.bf16.msra.mxu0 %v691
    %744 = vmatprep.subr.bf16.mxu0 0
    %745 = vmatpush2.bf16.msra.mxu0 %v690
    %746 = vmatprep.mubr.bf16.mxu0 %v578
    %747 = vmatmul.mubr.bf16.gmra.mxu0 %v577
    %v748 = vpop.f32.mrf.mxu0
    %v749 = vadd.f32 %v616, %v748
    %v750 = vpop.f32.mrf.mxu0
    %v751 = vpop.f32.mrf.mxu0
    %v752 = vpop.f32.mrf.mxu0
    %753 = vdwg.mxu0
    %v754 = vmax.f32 %v749, 0.0
    %v755 = vpack.c.bf16 %v754, %v754
    %v756 = vld [vmem:[#allocation8] sm:$0xf]
    %v757 = vld [vmem:[#allocation8 + $0x4] sm:$0xf]
    %v758 = vld [vmem:[#allocation8 + $0x8] sm:$0xf]
    %v759 = vld [vmem:[#allocation8 + $0xc] sm:$0xf]
    %v760 = vld [vmem:[#allocation8 + $0x10] sm:$0xf]
    %v761 = vld [vmem:[#allocation8 + $0x14] sm:$0xf]
    %v762 = vld [vmem:[#allocation8 + $0x18] sm:$0xf]
    %v763 = vld [vmem:[#allocation8 + $0x1c] sm:$0xf]
    %v764 = vld [vmem:[#allocation8 + $0x20] sm:$0xf]
    %v765 = vld [vmem:[#allocation8 + $0x24] sm:$0xf]
    %v766 = vld [vmem:[#allocation8 + $0x28] sm:$0xf]
    %v767 = vld [vmem:[#allocation8 + $0x2c] sm:$0xf]
    %v768 = vld [vmem:[#allocation8 + $0x30] sm:$0xf]
    %v769 = vld [vmem:[#allocation8 + $0x34] sm:$0xf]
    %v770 = vld [vmem:[#allocation8 + $0x38] sm:$0xf]
    %v771 = vld [vmem:[#allocation8 + $0x3c] sm:$0xf]
    %v772 = vld [vmem:[%s6] sm:$0x1]
    %v774 = vlaneseq
    %v775 = vshrl.u32 %v774, 7
    %v776 = vsub.s32 0, %v775
    %v777 = vrot.slane %v772, %v776
    %v795 = vunpack.c.l.b16 %v756
    %v796 = vunpack.c.l.b16 %v757
    %v797 = vunpack.c.l.b16 %v758
    %v798 = vunpack.c.l.b16 %v759
    %v799 = vunpack.c.l.b16 %v760
    %v800 = vunpack.c.l.b16 %v761
    %v801 = vunpack.c.l.b16 %v762
    %v802 = vunpack.c.l.b16 %v763
    %v803 = vunpack.c.l.b16 %v764
    %v804 = vunpack.c.l.b16 %v765
    %v805 = vunpack.c.l.b16 %v766
    %v806 = vunpack.c.l.b16 %v767
    %v807 = vunpack.c.l.b16 %v768
    %v808 = vunpack.c.l.b16 %v769
    %v809 = vunpack.c.l.b16 %v770
    %v810 = vunpack.c.l.b16 %v771
    %v811 = vpack.c.b16 %v796, %v795
    %v812 = vpack.c.b16 %v798, %v797
    %v813 = vpack.c.b16 %v800, %v799
    %v814 = vpack.c.b16 %v802, %v801
    %v815 = vpack.c.b16 %v804, %v803
    %v816 = vpack.c.b16 %v806, %v805
    %v817 = vpack.c.b16 %v808, %v807
    %v818 = vpack.c.b16 %v810, %v809
    %827 = vmatprep.subr.bf16.mxu0 0
    %828 = vmatpush1.bf16.msra.mxu0 %v818
    %829 = vmatprep.subr.bf16.mxu0 0
    %830 = vmatpush1.bf16.msra.mxu0 %v817
    %831 = vmatprep.subr.bf16.mxu0 0
    %832 = vmatpush1.bf16.msra.mxu0 %v816
    %833 = vmatprep.subr.bf16.mxu0 0
    %834 = vmatpush1.bf16.msra.mxu0 %v815
    %835 = vmatprep.subr.bf16.mxu0 0
    %836 = vmatpush1.bf16.msra.mxu0 %v814
    %837 = vmatprep.subr.bf16.mxu0 0
    %838 = vmatpush1.bf16.msra.mxu0 %v813
    %839 = vmatprep.subr.bf16.mxu0 0
    %840 = vmatpush1.bf16.msra.mxu0 %v812
    %841 = vmatprep.subr.bf16.mxu0 0
    %842 = vmatpush1.bf16.msra.mxu0 %v811
    %843 = vmatprep.subr.bf16.mxu0 0
    %844 = vmatpush2.bf16.msra.mxu0 0
    %845 = vmatprep.subr.bf16.mxu0 0
    %846 = vmatpush2.bf16.msra.mxu0 0
    %847 = vmatprep.subr.bf16.mxu0 0
    %848 = vmatpush2.bf16.msra.mxu0 0
    %849 = vmatprep.subr.bf16.mxu0 0
    %850 = vmatpush2.bf16.msra.mxu0 0
    %851 = vmatprep.subr.bf16.mxu0 0
    %852 = vmatpush2.bf16.msra.mxu0 0
    %853 = vmatprep.subr.bf16.mxu0 0
    %854 = vmatpush2.bf16.msra.mxu0 0
    %855 = vmatprep.subr.bf16.mxu0 0
    %856 = vmatpush2.bf16.msra.mxu0 0
    %857 = vmatprep.subr.bf16.mxu0 0
    %858 = vmatpush2.bf16.msra.mxu0 0
    %859 = vmatprep.mubr.bf16.mxu0 0
    %860 = vmatmul.mubr.bf16.gmra.mxu0 %v755
    %v861 = vpop.f32.mrf.mxu0
    %v862 = vadd.f32 %v777, %v861
    %v863 = vpop.f32.mrf.mxu0
    %v864 = vpop.f32.mrf.mxu0
    %v865 = vpop.f32.mrf.mxu0
    %866 = vdwg.mxu0
    %867 = vst [vmem:[#allocation10] sm:$0xff] %v862
    // Predicated region
    $region46: #{tpu_custom_call.1} parent=1 // pred_check
      _
    $region47: #{tpu_custom_call.1} parent=1 // pred_check_branch
      %869 = sbr.rel (0) target = $region49
    $region48: #{tpu_custom_call.1} parent=1 // pred_region
      %s871 = ssub.s32 128, 128
      %872 = vsyncadd [#allocation4], %s871
      %s874 = sshll.u32 [#allocation10], 4
      %s875 = int_to_ptr.vmem [resolvable:$true] %s874
      %877 = dma.vmem_to_hbm [thread:$0]  %s875, 128, %s7, [#allocation4]
    $region49: #{tpu_custom_call.1} parent=1 // pred_fallthru
      _
    // Predicated region
    $region50: #{tpu_custom_call.1} parent=1 // pred_check
      _
    $region51: #{tpu_custom_call.1} parent=1 // pred_check_branch
      %879 = sbr.rel (0) target = $region53
    $region52: #{tpu_custom_call.1} parent=1 // pred_region
      %880 = dma.done [#allocation4], 128
    $region53: #{tpu_custom_call.1} parent=1 // pred_fallthru
      _
    %881 = vsyncpa [#allocation3], 1
    %882 = vsyncpa [#allocation6], 1
    %883 = vsyncpa [#allocation9], 1
    %884 = vsyncpa [#allocation4], 1

</llo_original>
